<compile_context>
chip_gen: v5e
topology: v5e:2x2
jax: 0.10.0
libtpu: 0.0.40
codegen_flags: <defaults>
</compile_context>

<pallas_src>
import functools

import jax
import jax.numpy as jnp
import numpy as np
from jax.experimental import pallas as pl
from jax.experimental.pallas import tpu as pltpu


def _round_up(x, m):
    return (x + m - 1) // m * m


def _tpu_mxu_hint():
    """Best-effort chip hint -> (k_align, max_row_tile).

    v5e's MXU is 4x128x128, so 128-wide K tiles already saturate it; v6e/v7x
    have a 2x256x256 MXU, so prefer 256-aligned K and larger row tiles once
    the problem grows past a single 128 tile.  Pure tuning hint -- both
    settings are correct on every generation.
    """
    try:
        kind = jax.devices()[0].device_kind.lower()
    except Exception:
        return 128, 256
    if "v5 lite" in kind or "v5e" in kind:
        return 128, 256
    return 256, 512


def _choose_row_tile(R, max_tile):
    """Rows per grid step: multiple of 8, preferring an exact divisor of R
    (no row padding -> no post-kernel row slice) and >= 2 grid tiles (v7x has
    two TensorCores and the row axis is marked "parallel")."""
    if R % 8 == 0:
        divisors = [t for t in range(8, min(R, max_tile) + 1, 8) if R % t == 0]
        if divisors:
            multi = [t for t in divisors if R // t >= 2]
            return max(multi) if multi else max(divisors)
    if R <= 8:
        return 8
    return min(max_tile, _round_up((R + 1) // 2, 8))


def _embed_kernel(ids_ref, tab_ref, out_ref):
    """One row-tile per grid step.

    ids_ref: (T, 4) int32  -- [token, paper, position, segment] ids, already
                              offset into the combined vocabulary.
    tab_ref: (K, Ep) float -- combined, zero-row-masked, padded table
                              (grid-invariant, single-buffered).
    out_ref: (T, Ep) float32.
    """
    T = out_ref.shape[0]
    K = tab_ref.shape[0]

    ids = ids_ref[...]                                       # (T, 4)
    col = jax.lax.broadcasted_iota(jnp.int32, (T, K), 1)     # column index
    # Combined one-hot: up to four 1s per row.  The four offset ranges are
    # disjoint, so a single MXU matmul sums the four embeddings.  Keeping the
    # full Ep in one N block amortizes this VPU work over all output columns.
    onehot = ((col == ids[:, 0:1]) | (col == ids[:, 1:2]) |
              (col == ids[:, 2:3]) | (col == ids[:, 3:4]))
    onehot = onehot.astype(tab_ref.dtype)                    # 0/1: exact in bf16

    # f32 tables: Mosaic's f32 MXU matmul path is full precision (bit-parity
    # with the gather reference is asserted in __main__); bf16 tables give
    # exact per-element products (0/1 one-hot) with f32 accumulation.
    out_ref[...] = jnp.dot(onehot, tab_ref[...],
                           preferred_element_type=jnp.float32)


def make_combined_table(token_table, paper_table, position_table,
                        segment_table, *, table_dtype=jnp.float32):
    """Build the fused (K, Ep) embedding table ONCE at init.

    Hoisted out of the per-call path: the concat / row-0 zeroing / pad / cast
    each cost a full-table HBM pass and must not run on every forward.
    Returns (combined_table, meta) where meta holds the static offsets and
    tiling hints for `bert_embedding_aepe_seq`.
    """
    E = token_table.shape[1]
    v_tok = token_table.shape[0]
    v_pap = paper_table.shape[0]
    v_pos = position_table.shape[0]
    v_seg = segment_table.shape[0]
    total = v_tok + v_pap + v_pos + v_seg

    k_align, max_row_tile = _tpu_mxu_hint()
    K = _round_up(total, 128)
    if k_align == 256 and K > 128:
        K = _round_up(total, 256)
    # Keep Ep minimal: pad the lane dim only when E is not already 128-aligned
    # so the post-kernel lane un-pad slice disappears whenever E % 128 == 0.
    Ep = E if E % 128 == 0 else _round_up(E, 128)

    if K > 1024:
        # TODO(synk): beyond ~0.5-1.3K combined rows (chip-dependent) the
        # one-hot matmul loses to a scalar-prefetch DMA row-gather, and a
        # resident 30k x 768 table cannot fit v7x's 64 MiB VMEM at all.
        raise NotImplementedError(
            f"combined vocab K={K} exceeds the one-hot-matmul crossover; "
            "switch to the scalar-prefetch DMA row-gather path")

    tok = token_table.astype(jnp.float32).at[0].set(0.0)     # id 0 -> zero row
    pap = paper_table.astype(jnp.float32).at[0].set(0.0)
    combined = jnp.concatenate(
        [tok, pap, position_table.astype(jnp.float32),
         segment_table.astype(jnp.float32)], axis=0)
    combined = jnp.pad(combined, ((0, K - total), (0, Ep - E)))
    combined = combined.astype(table_dtype)

    meta = dict(off_pap=v_tok,
                off_pos=v_tok + v_pap,
                off_seg=v_tok + v_pap + v_pos,
                embed_size=E,
                max_row_tile=max_row_tile)
    return combined, meta


@functools.partial(
    jax.jit,
    static_argnames=("off_pap", "off_pos", "off_seg", "embed_size",
                     "max_row_tile"))
def bert_embedding_aepe_seq(sequence, position_ids, segment_ids, paper_ids,
                            combined_table, *, off_pap, off_pos, off_seg,
                            embed_size, max_row_tile=256):
    """Forward pass (eval mode).  `combined_table` / meta come from
    `make_combined_table` (built once at init)."""
    B, S_pap = paper_ids.shape
    S_seq = sequence.shape[1]
    K, Ep = combined_table.shape
    E = embed_size

    # Zero-pad the token sequence to S_pap: padded ids are 0 and the token
    # row 0 is zeroed, so this exactly reproduces
    # `paper_emb[:, :S_seq] += seq_emb`.
    seq_padded = jnp.zeros((B, S_pap), jnp.int32).at[:, :S_seq].set(
        sequence.astype(jnp.int32))

    ids = jnp.stack([
        seq_padded,
        paper_ids.astype(jnp.int32) + off_pap,
        position_ids.astype(jnp.int32) + off_pos,
        segment_ids.astype(jnp.int32) + off_seg,
    ], axis=-1).reshape(B * S_pap, 4)                        # (R, 4)

    # ---- row tiling ----------------------------------------------------------
    R = B * S_pap
    T = _choose_row_tile(R, max_row_tile)
    R_pad = _round_up(R, T)
    if R_pad != R:
        # Padded rows are all-zero ids -> hit the zeroed token row -> zeros.
        ids = jnp.pad(ids, ((0, R_pad - R), (0, 0)))
    n_tiles = R_pad // T

    # Explicit VMEM budget (matters most on v7x: 64 MiB physical, 32 MiB
    # default scoped): single-buffered table + double-buffered ids / output
    # tiles + the (T, K) one-hot intermediate, with 2x slack.
    itemsize = jnp.dtype(combined_table.dtype).itemsize
    vmem_est = (K * Ep * itemsize          # combined table (single buffer)
                + 2 * T * 4 * 4            # packed ids (double-buffered)
                + 2 * T * Ep * 4           # output tiles (double-buffered)
                + T * K * 4)               # one-hot intermediate
    vmem_limit = int(min(48 << 20, max(16 << 20, 2 * vmem_est)))

    out = pl.pallas_call(
        _embed_kernel,
        out_shape=jax.ShapeDtypeStruct((R_pad, Ep), jnp.float32),
        grid=(n_tiles,),
        in_specs=[
            # Packed ids: one (T, 4) DMA per step.  Only 4/128 lanes wide but
            # ~4 KB/step -> negligible; move to scalar prefetch (SMEM) if the
            # id stream ever grows.
            pl.BlockSpec((T, 4), lambda r: (r, 0)),
            # Grid-invariant combined table: single-buffered -- the index_map
            # never changes so no re-DMA happens, and default double
            # buffering would just double its resident VMEM.
            pl.BlockSpec((K, Ep), lambda r: (0, 0),
                         pipeline_mode=pl.Buffered(1)),
        ],
        out_specs=pl.BlockSpec((T, Ep), lambda r: (r, 0)),
        compiler_params=pltpu.CompilerParams(
            dimension_semantics=("parallel",),
            vmem_limit_bytes=vmem_limit),
    )(ids, combined_table)

    # Only slice when padding was actually introduced (the slice is an extra
    # HBM pass); with T an exact divisor of R and E % 128 == 0 it vanishes.
    if R_pad != R or Ep != E:
        out = out[:R, :E]
    return out.reshape(B, S_pap, E)


def _reference_forward(sequence, position_ids, segment_ids, paper_ids,
                       token_table, paper_table, position_table, segment_table):
    """Plain-JAX transcription of the PyTorch forward (eval mode)."""
    seq_emb = token_table[sequence]                                   # (B, Ss, E)
    seq_emb = jnp.where((sequence == 0)[..., None], 0.0, seq_emb)
    paper_emb = paper_table[paper_ids]                                # (B, Sp, E)
    paper_emb = jnp.where((paper_ids == 0)[..., None], 0.0, paper_emb)
    paper_emb = paper_emb.at[:, :sequence.shape[1], :].add(seq_emb)
    paper_emb = paper_emb + position_table[position_ids]
    paper_emb = paper_emb + segment_table[segment_ids]
    return paper_emb


if __name__ == "__main__":
    # Small, module-consistent shapes.
    B = 2
    S_seq = 8        # token sequence length
    S_pap = 16       # paper sequence length (>= S_seq)
    E = 32           # embed_size
    VOCAB = 32       # vocab_size
    N_PAPERS = 16    # n_papers
    MAX_LEN = 16     # max_len

    key = jax.random.PRNGKey(0)
    k_tok, k_pap, k_pos, k_seg, k_ids1, k_ids2, k_ids3 = jax.random.split(key, 7)

    # Deterministic "parameters" (Embedding weight tables).
    token_table = jax.random.normal(k_tok, (VOCAB, E), jnp.float32)
    paper_table = jax.random.normal(k_pap, (N_PAPERS, E), jnp.float32)
    position_table = jax.random.normal(k_pos, (MAX_LEN, E), jnp.float32)
    segment_table = jax.random.normal(k_seg, (3, E), jnp.float32)

    # Inputs (include zeros so the masking paths are exercised).
    sequence = jax.random.randint(k_ids1, (B, S_seq), 0, VOCAB, jnp.int32)
    paper_ids = jax.random.randint(k_ids2, (B, S_pap), 0, N_PAPERS, jnp.int32)
    segment_ids = jax.random.randint(k_ids3, (B, S_pap), 0, 3, jnp.int32)
    position_ids = jnp.broadcast_to(jnp.arange(S_pap, dtype=jnp.int32),
                                    (B, S_pap))

    # ---- f32 tables: exact parity with the gather-based reference -----------
    combined_f32, meta = make_combined_table(
        token_table, paper_table, position_table, segment_table,
        table_dtype=jnp.float32)
    out = bert_embedding_aepe_seq(sequence, position_ids, segment_ids,
                                  paper_ids, combined_f32, **meta)
    out = jax.block_until_ready(out)
    ref = _reference_forward(sequence, position_ids, segment_ids, paper_ids,
                             token_table, paper_table, position_table,
                             segment_table)
    np.testing.assert_allclose(np.asarray(out), np.asarray(ref),
                               rtol=1e-5, atol=1e-5)

    # ---- bf16 tables (recommended on v6e/v7x): exact 0/1 one-hot, f32 acc ----
    combined_bf16, meta_bf = make_combined_table(
        token_table, paper_table, position_table, segment_table,
        table_dtype=jnp.bfloat16)
    out_bf = bert_embedding_aepe_seq(sequence, position_ids, segment_ids,
                                     paper_ids, combined_bf16, **meta_bf)
    out_bf = jax.block_until_ready(out_bf)
    _bf = lambda t: t.astype(jnp.bfloat16).astype(jnp.float32)
    ref_bf = _reference_forward(sequence, position_ids, segment_ids, paper_ids,
                                _bf(token_table), _bf(paper_table),
                                _bf(position_table), _bf(segment_table))
    np.testing.assert_allclose(np.asarray(out_bf), np.asarray(ref_bf),
                               rtol=1e-3, atol=1e-3)

    print("KERNEL_OK")
</pallas_src>

<mosaic_0001>
module attributes {stable_mosaic.version = 11 : i64} {
  func.func @_embed_kernel(%arg0: i32, %arg1: memref<16x4xi32, #tpu.memory_space<vmem>>, %arg2: memref<128x128xf32, #tpu.memory_space<vmem>>, %arg3: memref<16x128xf32, #tpu.memory_space<vmem>>) attributes {dimension_semantics = [#tpu.dimension_semantics<parallel>], iteration_bounds = array<i64: 2>, scalar_prefetch = 0 : i64, scratch_operands = 0 : i64, tpu.core_type = #tpu.core_type<tc>, window_params = [{transform_indices = @transform_0, window_bounds = array<i64: 16, 4>}, {pipeline_mode = #tpu.pipeline_mode<synchronous>, transform_indices = @transform_1, window_bounds = array<i64: 128, 128>}, {transform_indices = @transform_2, window_bounds = array<i64: 16, 128>}]} {
    %c0 = arith.constant 0 : index
    %c0_0 = arith.constant 0 : index
    %0 = vector.load %arg1[%c0, %c0_0] : memref<16x4xi32, #tpu.memory_space<vmem>>, vector<16x4xi32>
    %1 = tpu.iota {dimensions = array<i32: 1>} : vector<16x128xi32>
    %2 = vector.extract_strided_slice %0 {offsets = [0, 0], sizes = [16, 1], strides = [1, 1]} : vector<16x4xi32> to vector<16x1xi32>
    %3 = vector.broadcast %2 : vector<16x1xi32> to vector<16x128xi32>
    %4 = arith.cmpi eq, %1, %3 : vector<16x128xi32>
    %5 = vector.extract_strided_slice %0 {offsets = [0, 1], sizes = [16, 1], strides = [1, 1]} : vector<16x4xi32> to vector<16x1xi32>
    %6 = vector.broadcast %5 : vector<16x1xi32> to vector<16x128xi32>
    %7 = arith.cmpi eq, %1, %6 : vector<16x128xi32>
    %8 = arith.ori %4, %7 : vector<16x128xi1>
    %9 = vector.extract_strided_slice %0 {offsets = [0, 2], sizes = [16, 1], strides = [1, 1]} : vector<16x4xi32> to vector<16x1xi32>
    %10 = vector.broadcast %9 : vector<16x1xi32> to vector<16x128xi32>
    %11 = arith.cmpi eq, %1, %10 : vector<16x128xi32>
    %12 = arith.ori %8, %11 : vector<16x128xi1>
    %13 = vector.extract_strided_slice %0 {offsets = [0, 3], sizes = [16, 1], strides = [1, 1]} : vector<16x4xi32> to vector<16x1xi32>
    %14 = vector.broadcast %13 : vector<16x1xi32> to vector<16x128xi32>
    %15 = arith.cmpi eq, %1, %14 : vector<16x128xi32>
    %16 = arith.ori %12, %15 : vector<16x128xi1>
    %17 = arith.extui %16 : vector<16x128xi1> to vector<16x128xi32>
    %18 = arith.sitofp %17 : vector<16x128xi32> to vector<16x128xf32>
    %c0_1 = arith.constant 0 : index
    %c0_2 = arith.constant 0 : index
    %19 = vector.load %arg2[%c0_1, %c0_2] : memref<128x128xf32, #tpu.memory_space<vmem>>, vector<128x128xf32>
    %cst = arith.constant dense<0.000000e+00> : vector<16x128xf32>
    %20 = tpu.matmul %18, %19, %cst {dimension_numbers = #tpu.dot_dimension_numbers<[1], [0], [0], [1], [0, 0, 1, 1], [], []>} : vector<16x128xf32>, vector<128x128xf32>, vector<16x128xf32> -> vector<16x128xf32>
    %c0_3 = arith.constant 0 : index
    %c0_4 = arith.constant 0 : index
    %21 = vector.load %arg3[%c0_3, %c0_4] : memref<16x128xf32, #tpu.memory_space<vmem>>, vector<16x128xf32>
    tpu.vector_store %arg3[%c0_3, %c0_4], %20 {strides = array<i32>} : memref<16x128xf32, #tpu.memory_space<vmem>>, vector<16x128xf32>,
    return
  }
  func.func @transform_0(%arg0: i32) -> (i32, i32) {
    %c0_i32 = arith.constant 0 : i32
    %c0_i32_0 = arith.constant 0 : i32
    return %arg0, %c0_i32 : i32, i32
  }
  func.func @transform_1(%arg0: i32) -> (i32, i32) {
    %c0_i32 = arith.constant 0 : i32
    %c0_i32_0 = arith.constant 0 : i32
    %c0_i32_1 = arith.constant 0 : i32
    return %c0_i32, %c0_i32_0 : i32, i32
  }
  func.func @transform_2(%arg0: i32) -> (i32, i32) {
    %c0_i32 = arith.constant 0 : i32
    %c0_i32_0 = arith.constant 0 : i32
    return %arg0, %c0_i32 : i32, i32
  }
}

</mosaic_0001>

<llo_original>
// kernel: bert_embedding_aepe_seq.1
$region0: #{bert_embedding_aepe_seq.1}
  #allocation0 [shape = 'u32[]', space=smem, size = 0x4, offset = 0x4, fixed_abs, tag = 'smem constant byte address 0x4 - core index']
  #allocation1 [shape = 'u32[72,128]{1,0:T(1,128)}', space=vmem, size = 0x9000, scoped, tag = 'internal scratch']
  %s0 = inlined_call_operand.vmem [shape: s32[32,4], index: 0, kind: input, shape index: {}]
  %s1 = inlined_call_operand.hbm [shape: f32[128,128], index: 1, kind: input, shape index: {}]
  %s2 = inlined_call_operand.hbm [shape: f32[32,128], index: 2, kind: output, shape index: {}]
  %s3 = sld [smem:[#allocation0]]
  $region45: #{bert_embedding_aepe_seq.1} parent=0
    _
  %s5 = ssub.s32 1, %s3
  %s6 = scalar_select 0, %s5, %s3
  $region1: #{bert_embedding_aepe_seq.1} parent=0
    #allocation2 [shape = 'u8[65536]{0}', space=vmem, size = 0x10000, scoped, tag = 'input window, operand 1, single buffered']
    #allocation3 [shape = 's32[2]{0}', space=sflag, size = 0x8, scoped, tag = 'scoped memory for bert_embedding_aepe_seq.1']
    #allocation4 [shape = 's32[2]{0}', space=sflag, size = 0x8, scoped, tag = 'scoped memory for bert_embedding_aepe_seq.1']
    #allocation5 [shape = 'u8[16384]{0}', space=vmem, size = 0x4000, scoped, tag = 'output window, operand 0']
    %7 = vsyncpa [#allocation3], 0
    %8 = vsyncpa [#allocation4], 0
    %s9 = scalar_lea.sflag [#allocation4], 1
    %10 = vsyncpa %s9, 0
    loop: start=0, step=1, limit=4
    $region2: #{bert_embedding_aepe_seq.1} parent=1 // loop_pre_header
      _
    $region3: #{bert_embedding_aepe_seq.1} parent=1 // loop_header
      %s12 = sphi 0, %s16
      %p13 = scmp.ge.s32.totalorder %s12, 4
      %s22 = sphi 0, %s24
      %s25 = sphi 0, %s22
      %s26 = sphi 0, %s25
      %s42 = sphi 0, %s26
      %s46 = sphi 0, %s46
      %s48 = sphi 0, %s46
      %s49 = sphi 0, %s48
      %s63 = sphi 0, %s49
      %s69 = sphi 0, %s71
      %s72 = sphi 0, %s69
      %s73 = sphi 0, %s72
      %s89 = sphi 0, %s73
    $region4: #{bert_embedding_aepe_seq.1} parent=1 // loop_header_branch
      %15 = sbr.rel (%p13) target = $region8
    $region5: #{bert_embedding_aepe_seq.1} parent=1 // loop_body
      %s17 = ssub.s32 %s12, 1
      %s18 = ssub.s32 %s12, 2
      %s19 = sadd.s32 %s12, 1
      %s20 = ssub.s32 %s12, %s19
      %p21 = scmp.eq.s32.totalorder %s20, 0
      %s23 = sadd.s32 %s22, 1
      %s24 = scalar_select %p21, %s22, %s23
      %p27 = pneg %p21
      %p28 = scmp.eq.s32.totalorder %s12, 1
      %p29 = por %p27, %p28
      %p30 = scmp.ne.s32.totalorder %s22, %s25
      %p31 = scmp.eq.s32.totalorder %s12, 0
      %p32 = por %p30, %p31
      %p33 = scmp.ne.s32.totalorder %s22, %s25
      %p34 = scmp.eq.s32.totalorder %s17, 1
      %p35 = por %p33, %p34
      %p36 = scmp.ne.s32.totalorder %s25, %s26
      %p37 = scmp.eq.s32.totalorder %s17, 0
      %p38 = por %p36, %p37
      %p39 = scmp.ne.s32.totalorder %s25, %s26
      %p40 = scmp.eq.s32.totalorder %s18, 1
      %p41 = por %p39, %p40
      %p43 = scmp.ne.s32.totalorder %s26, %s42
      %p44 = scmp.eq.s32.totalorder %s18, 0
      %p45 = por %p43, %p44
      %s47 = sadd.s32 %s46, 1
      %p50 = scmp.eq.s32.totalorder %s12, 1
      %p51 = scmp.ne.s32.totalorder %s46, %s48
      %p52 = scmp.eq.s32.totalorder %s12, 0
      %p53 = por %p51, %p52
      %p54 = scmp.ne.s32.totalorder %s46, %s48
      %p55 = scmp.eq.s32.totalorder %s17, 1
      %p56 = por %p54, %p55
      %p57 = scmp.ne.s32.totalorder %s48, %s49
      %p58 = scmp.eq.s32.totalorder %s17, 0
      %p59 = por %p57, %p58
      %p60 = scmp.ne.s32.totalorder %s48, %s49
      %p61 = scmp.eq.s32.totalorder %s18, 1
      %p62 = por %p60, %p61
      %p64 = scmp.ne.s32.totalorder %s49, %s63
      %p65 = scmp.eq.s32.totalorder %s18, 0
      %p66 = por %p64, %p65
      %s67 = ssub.s32 %s12, %s19
      %p68 = scmp.eq.s32.totalorder %s67, 0
      %s70 = sadd.s32 %s69, 1
      %s71 = scalar_select %p68, %s69, %s70
      %p74 = pneg %p68
      %p75 = scmp.eq.s32.totalorder %s12, 1
      %p76 = por %p74, %p75
      %p77 = scmp.ne.s32.totalorder %s69, %s72
      %p78 = scmp.eq.s32.totalorder %s12, 0
      %p79 = por %p77, %p78
      %p80 = scmp.ne.s32.totalorder %s69, %s72
      %p81 = scmp.eq.s32.totalorder %s17, 1
      %p82 = por %p80, %p81
      %p83 = scmp.ne.s32.totalorder %s72, %s73
      %p84 = scmp.eq.s32.totalorder %s17, 0
      %p85 = por %p83, %p84
      %p86 = scmp.ne.s32.totalorder %s72, %s73
      %p87 = scmp.eq.s32.totalorder %s18, 1
      %p88 = por %p86, %p87
      %p90 = scmp.ne.s32.totalorder %s73, %s89
      %p91 = scmp.eq.s32.totalorder %s18, 0
      %p92 = por %p90, %p91
      %p93 = scmp.le.s32.totalorder 1, %s12
      %p94 = scmp.lt.s32.totalorder %s12, 3
      %p95 = pnand %p93, %p94
      %p96 = pneg %p95
      // Predicated region
      $region9: #{bert_embedding_aepe_seq.1} parent=5 // pred_check
        _
      $region10: #{bert_embedding_aepe_seq.1} parent=5 // pred_check_branch
        %98 = sbr.rel (%p95) target = $region12
      $region11: #{bert_embedding_aepe_seq.1} parent=5 // pred_region
        %s99 = ssub.s32 %s12, 1
        // Predicated region
        $region13: #{bert_embedding_aepe_seq.1} parent=11 // pred_check
          %p100 = pneg %p59
        $region14: #{bert_embedding_aepe_seq.1} parent=11 // pred_check_branch
          %102 = sbr.rel (%p100) target = $region16
        $region15: #{bert_embedding_aepe_seq.1} parent=11 // pred_region
          %104 = vsyncadd [#allocation3], 0
          %s105 = sshll.u32 %s1, 4
          %s106 = int_to_ptr.hbm [resolvable:$true] %s105
          %s107 = sshll.u32 [#allocation2], 4
          %s108 = int_to_ptr.vmem [resolvable:$true] %s107
          %113 = dma.hbm_to_vmem [thread:$0]  %s106, 2048, %s108, [#allocation3], 128, 128, 8
        $region16: #{bert_embedding_aepe_seq.1} parent=11 // pred_fallthru
          _
      $region12: #{bert_embedding_aepe_seq.1} parent=5 // pred_fallthru
        _
      %p114 = scmp.lt.s32.totalorder %s12, 2
      // Predicated region
      $region17: #{bert_embedding_aepe_seq.1} parent=5 // pred_check
        %p115 = pneg %p114
      $region18: #{bert_embedding_aepe_seq.1} parent=5 // pred_check_branch
        %117 = sbr.rel (%p115) target = $region20
      $region19: #{bert_embedding_aepe_seq.1} parent=5 // pred_region
        // Predicated region
        $region21: #{bert_embedding_aepe_seq.1} parent=19 // pred_check
          %p118 = pneg %p32
        $region22: #{bert_embedding_aepe_seq.1} parent=19 // pred_check_branch
          %120 = sbr.rel (%p118) target = $region24
        $region23: #{bert_embedding_aepe_seq.1} parent=19 // pred_region
          %s121 = smul.u32 2, %s12
          %p122 = scmp.lt.s32.totalorder %s121, 3
          %s123 = scalar_select %p122, %s121, 3
          %s124 = smul.addr %s123, 8
          %s125 = scalar_lea.vmem %s0, %s124
          %s126 = smul.u32 2, %s12
        $region24: #{bert_embedding_aepe_seq.1} parent=19 // pred_fallthru
          _
      $region20: #{bert_embedding_aepe_seq.1} parent=5 // pred_fallthru
        _
      %p127 = scmp.le.s32.totalorder 1, %s12
      %p128 = scmp.lt.s32.totalorder %s12, 3
      %p129 = pnand %p127, %p128
      %p130 = pneg %p129
      // Predicated region
      $region25: #{bert_embedding_aepe_seq.1} parent=5 // pred_check
        _
      $region26: #{bert_embedding_aepe_seq.1} parent=5 // pred_check_branch
        %132 = sbr.rel (%p129) target = $region28
      $region27: #{bert_embedding_aepe_seq.1} parent=5 // pred_region
        %s133 = ssub.s32 %s12, 1
        // Predicated region
        $region29: #{bert_embedding_aepe_seq.1} parent=27 // pred_check
          %p134 = pneg %p59
        $region30: #{bert_embedding_aepe_seq.1} parent=27 // pred_check_branch
          %136 = sbr.rel (%p134) target = $region32
        $region31: #{bert_embedding_aepe_seq.1} parent=27 // pred_region
          %138 = dma.done [#allocation3], 2048
        $region32: #{bert_embedding_aepe_seq.1} parent=27 // pred_fallthru
          _
        %s139 = smul.u32 2, %s17
        %p140 = scmp.lt.s32.totalorder %s139, 3
        %s141 = scalar_select %p140, %s139, 3
        %s142 = smul.addr %s141, 8
        %s143 = scalar_lea.vmem %s0, %s142
        %p144 = pneg %p38
        %p145 = pneg %p35
        %p146 = pneg %p59
        %p147 = pneg %p56
        %p148 = pneg %p85
        %p149 = pneg %p82
        %s150 = sand.u32 %s72, 1
        %s151 = scalar_lea.sflag [#allocation4], %s150
        %s152 = sand.u32 %s72, 1
        %s153 = smul.addr %s152, 16
        %s154 = scalar_lea.vmem [#allocation5], %s153
        %s155 = smul.u32 2, %s17
        %p156 = scmp.lt.s32.totalorder %s155, 3
        %s157 = scalar_select %p156, %s155, 3
        %s158 = smul.addr %s157, 8
        %s159 = scalar_lea.vmem %s0, %s158
        %s160 = smul.u32 2, %s17
        %s161 = smul.u32 2, %s17
        %v162 = vld [vmem:[%s159] sm:$0xff]
        %v163 = vld [vmem:[%s159 + $0x8] sm:$0xff]
        %v164 = vlaneseq
        %v165 = vand.u32 %v164, 127
        %166 = vset.pattern.permute.xlu0 0
        %167 = vperm.xlu0 %166, %v162
        %v168 = vpop.permute.xlu0 %167
        %169 = vset.pattern.permute.xlu0 0
        %170 = vperm.xlu0 %169, %v163
        %v171 = vpop.permute.xlu0 %170
        %vm172 = vcmp.eq.s32.totalorder %v165, %v168
        %vm173 = vcmp.eq.s32.totalorder %v165, %v171
        %174 = vset.pattern.permute.xlu0 1
        %175 = vperm.xlu0 %174, %v162
        %v176 = vpop.permute.xlu0 %175
        %177 = vset.pattern.permute.xlu0 1
        %178 = vperm.xlu0 %177, %v163
        %v179 = vpop.permute.xlu0 %178
        %vm180 = vcmp.eq.s32.totalorder %v165, %v176
        %vm181 = vcmp.eq.s32.totalorder %v165, %v179
        %vm182 = vmor %vm172, %vm180
        %vm183 = vmor %vm173, %vm181
        %184 = vset.pattern.permute.xlu0 2
        %185 = vperm.xlu0 %184, %v162
        %v186 = vpop.permute.xlu0 %185
        %187 = vset.pattern.permute.xlu0 2
        %188 = vperm.xlu0 %187, %v163
        %v189 = vpop.permute.xlu0 %188
        %vm190 = vcmp.eq.s32.totalorder %v165, %v186
        %vm191 = vcmp.eq.s32.totalorder %v165, %v189
        %vm192 = vmor %vm182, %vm190
        %vm193 = vmor %vm183, %vm191
        %194 = vset.pattern.permute.xlu0 3
        %195 = vperm.xlu0 %194, %v162
        %v196 = vpop.permute.xlu0 %195
        %197 = vset.pattern.permute.xlu0 3
        %198 = vperm.xlu0 %197, %v163
        %v199 = vpop.permute.xlu0 %198
        %vm200 = vcmp.eq.s32.totalorder %v165, %v196
        %vm201 = vcmp.eq.s32.totalorder %v165, %v199
        %vm202 = vmor %vm192, %vm200
        %vm203 = vmor %vm193, %vm201
        %v204 = vsel %vm202, 1, 0
        %v205 = vsel %vm203, 1, 0
        %v206 = vcvt.s32.f32 %v204
        %v207 = vcvt.s32.f32 %v205
        %v208 = vld [vmem:[#allocation2] sm:$0xff]
        %v209 = vld [vmem:[#allocation2 + $0x8] sm:$0xff]
        %v210 = vld [vmem:[#allocation2 + $0x10] sm:$0xff]
        %v211 = vld [vmem:[#allocation2 + $0x18] sm:$0xff]
        %v212 = vld [vmem:[#allocation2 + $0x20] sm:$0xff]
        %v213 = vld [vmem:[#allocation2 + $0x28] sm:$0xff]
        %v214 = vld [vmem:[#allocation2 + $0x30] sm:$0xff]
        %v215 = vld [vmem:[#allocation2 + $0x38] sm:$0xff]
        %v216 = vld [vmem:[#allocation2 + $0x40] sm:$0xff]
        %v217 = vld [vmem:[#allocation2 + $0x48] sm:$0xff]
        %v218 = vld [vmem:[#allocation2 + $0x50] sm:$0xff]
        %v219 = vld [vmem:[#allocation2 + $0x58] sm:$0xff]
        %v220 = vld [vmem:[#allocation2 + $0x60] sm:$0xff]
        %v221 = vld [vmem:[#allocation2 + $0x68] sm:$0xff]
        %v222 = vld [vmem:[#allocation2 + $0x70] sm:$0xff]
        %v223 = vld [vmem:[#allocation2 + $0x78] sm:$0xff]
        %224 = vmatpush.msra.mxu0 %v223
        %225 = vmatpush.msra.mxu0 %v222
        %226 = vmatpush.msra.mxu0 %v221
        %227 = vmatpush.msra.mxu0 %v220
        %228 = vmatpush.msra.mxu0 %v219
        %229 = vmatpush.msra.mxu0 %v218
        %230 = vmatpush.msra.mxu0 %v217
        %231 = vmatpush.msra.mxu0 %v216
        %232 = vmatpush.msra.mxu0 %v215
        %233 = vmatpush.msra.mxu0 %v214
        %234 = vmatpush.msra.mxu0 %v213
        %235 = vmatpush.msra.mxu0 %v212
        %236 = vmatpush.msra.mxu0 %v211
        %237 = vmatpush.msra.mxu0 %v210
        %238 = vmatpush.msra.mxu0 %v209
        %239 = vmatpush.msra.mxu0 %v208
        %240 = vmatmul.f32.gmra.mxu0 %v206
        %v241 = vpop.f32.mrf.mxu0
        %v242 = vadd.f32 0.0, %v241
        %243 = vmatmul.f32.gmra.mxu0 %v207
        %v244 = vpop.f32.mrf.mxu0
        %v245 = vadd.f32 0.0, %v244
        %246 = vdwg.mxu0
        %247 = vst [vmem:[%s154] sm:$0xff] %v242
        %248 = vst [vmem:[%s154 + $0x8] sm:$0xff] %v245
        %s249 = sand.u32 %s72, 1
        %s250 = scalar_lea.sflag [#allocation4], %s249
        %s251 = sand.u32 %s72, 1
        %s252 = smul.addr %s251, 16
        %s253 = scalar_lea.vmem [#allocation5], %s252
        // Predicated region
        $region33: #{bert_embedding_aepe_seq.1} parent=27 // pred_check
          %p254 = pneg %p82
        $region34: #{bert_embedding_aepe_seq.1} parent=27 // pred_check_branch
          %256 = sbr.rel (%p254) target = $region36
        $region35: #{bert_embedding_aepe_seq.1} parent=27 // pred_region
          %s257 = smul.u32 2, %s17
          %259 = vsyncadd %s250, 0
          %s260 = smul.addr %s257, 8
          %s261 = scalar_lea.hbm %s2, %s260
          %s262 = sshll.u32 %s253, 4
          %s263 = int_to_ptr.vmem [resolvable:$true] %s262
          %s264 = sshll.u32 %s261, 4
          %s265 = int_to_ptr.hbm [resolvable:$true] %s264
          %270 = dma.vmem_to_hbm [thread:$0]  %s263, 256, %s265, %s250, 128, 128, 8
        $region36: #{bert_embedding_aepe_seq.1} parent=27 // pred_fallthru
          _
      $region28: #{bert_embedding_aepe_seq.1} parent=5 // pred_fallthru
        _
      %p271 = scmp.le.s32.totalorder 2, %s12
      // Predicated region
      $region37: #{bert_embedding_aepe_seq.1} parent=5 // pred_check
        %p272 = pneg %p271
      $region38: #{bert_embedding_aepe_seq.1} parent=5 // pred_check_branch
        %274 = sbr.rel (%p272) target = $region40
      $region39: #{bert_embedding_aepe_seq.1} parent=5 // pred_region
        %s275 = ssub.s32 %s12, 2
        // Predicated region
        $region41: #{bert_embedding_aepe_seq.1} parent=39 // pred_check
          %p276 = pneg %p88
        $region42: #{bert_embedding_aepe_seq.1} parent=39 // pred_check_branch
          %278 = sbr.rel (%p276) target = $region44
        $region43: #{bert_embedding_aepe_seq.1} parent=39 // pred_region
          %s279 = sand.u32 %s73, 1
          %s280 = scalar_lea.sflag [#allocation4], %s279
          %s281 = sand.u32 %s73, 1
          %s282 = smul.addr %s281, 16
          %s283 = scalar_lea.vmem [#allocation5], %s282
          %285 = dma.done %s280, 256
        $region44: #{bert_embedding_aepe_seq.1} parent=39 // pred_fallthru
          _
      $region40: #{bert_embedding_aepe_seq.1} parent=5 // pred_fallthru
        _
    $region6: #{bert_embedding_aepe_seq.1} parent=1 // loop_footer
      %s16 = sadd.s32 1, %s12
    $region7: #{bert_embedding_aepe_seq.1} parent=1 // loop_footer_branch
      %11 = sbr.rel target = $region3
    $region8: #{bert_embedding_aepe_seq.1} parent=1 // loop_exit
      _
    %286 = vsyncpa [#allocation3], 1
    %s287 = scalar_lea.sflag [#allocation3], 1
    %288 = vsyncpa %s287, 1
    %289 = vsyncpa [#allocation4], 1
    %s290 = scalar_lea.sflag [#allocation4], 1
    %291 = vsyncpa %s290, 1

</llo_original>
